<compile_context>
chip_gen: v7x
topology: tpu7x:2x2x1
jax: 0.10.0
libtpu: 0.0.40
codegen_flags: <defaults>
</compile_context>

<pallas_src>
import numpy as np
import jax
import jax.numpy as jnp
from jax.experimental import pallas as pl
from jax.experimental.pallas import tpu as pltpu

WINDOW_SIZE = 11
HALF = WINDOW_SIZE // 2            # 5
SIGMA = 1.5
DATA_RANGE = 2.0
K1, K2 = 0.01, 0.03
C1 = (K1 * DATA_RANGE) ** 2
C2 = (K2 * DATA_RANGE) ** 2


def _gaussian_window(size: int, sigma: float):
    # Matches pytorch_msssim._fspecial_gauss_1d (f32, normalized, symmetric).
    coords = np.arange(size, dtype=np.float64) - size // 2
    g = np.exp(-(coords ** 2) / (2.0 * sigma ** 2))
    g = (g / g.sum()).astype(np.float32)
    return tuple(float(v) for v in g)


_WIN = _gaussian_window(WINDOW_SIZE, SIGMA)


def _make_ssim_kernel(b: int, h: int, w: int):
    ho = h - WINDOW_SIZE + 1
    wo = w - WINDOW_SIZE + 1
    lanes = b * w
    inv_n = 1.0 / float(b * ho * wo)
    win = _WIN

    def kernel(x_ref, y_ref, out_ref, exx_ref, eyy_ref, exy_ref):
        # (H, B*W): sublanes = H, lanes = B*W (fully dense: 16 x 128).
        x = x_ref[...].astype(jnp.float32)
        y = y_ref[...].astype(jnp.float32)

        # Stage the second moments so the H-pass taps below are plain vld
        # ref-loads rather than vreg sublane slices (XLU relief on v6e/v7x).
        exx_ref[...] = x * x
        eyy_ref[...] = y * y
        exy_ref[...] = x * y

        # ---- pass 1: valid Gaussian filter along H (sublane axis). --------
        # 11 sublane-offset ref loads * scalar weight, accumulated on the VPU.
        def filt_h(ref):
            acc = win[0] * ref[0:ho, :].astype(jnp.float32)
            for k in range(1, WINDOW_SIZE):
                acc = acc + win[k] * ref[k:k + ho, :].astype(jnp.float32)
            return acc                                    # (ho, B*W)

        mu1, mu2 = filt_h(x_ref), filt_h(y_ref)
        e11, e22, e12 = filt_h(exx_ref), filt_h(eyy_ref), filt_h(exy_ref)

        # ---- pass 2: valid Gaussian filter along W (folded into lanes). ---
        # Each image occupies a contiguous group of `w` lanes, so a shift by
        # d along W is a lane rotation by d.  Centered symmetric form: since
        # the window is even (win[HALF+d] == win[HALF-d]), roll(+d)+roll(-d)
        # gives the correct centered sum regardless of rotation direction.
        # Valid outputs land at lane positions HALF..HALF+wo-1 inside each
        # group; the rest (incl. cross-group / wraparound lanes) is masked.
        def filt_w(a):
            acc = win[HALF] * a
            for d in range(1, HALF + 1):
                acc = acc + win[HALF + d] * (
                    pltpu.roll(a, shift=d % lanes, axis=1)
                    + pltpu.roll(a, shift=(lanes - d) % lanes, axis=1))
            return acc                                    # (ho, B*W)

        mu1, mu2 = filt_w(mu1), filt_w(mu2)
        e11, e22, e12 = filt_w(e11), filt_w(e22), filt_w(e12)

        mu1_sq = mu1 * mu1
        mu2_sq = mu2 * mu2
        mu1_mu2 = mu1 * mu2
        sigma1_sq = e11 - mu1_sq
        sigma2_sq = e22 - mu2_sq
        sigma12 = e12 - mu1_mu2

        # Single fused divide (one EUP divide instead of two).  Exact divide
        # keeps the 1e-4 self-check; pl.reciprocal(approx=True) is a further
        # option if a looser tolerance is acceptable.
        num = (2.0 * mu1_mu2 + C1) * (2.0 * sigma12 + C2)
        den = (mu1_sq + mu2_sq + C1) * (sigma1_sq + sigma2_sq + C2)
        ssim_map = num / den

        # Masked mean over the valid (b, ho, wo) positions; loss = 1 - mean.
        lane = jax.lax.broadcasted_iota(jnp.int32, (ho, lanes), 1)
        pos = lane % w
        valid = (pos >= HALF) & (pos < HALF + wo)
        total = jnp.sum(jnp.where(valid, ssim_map, 0.0))
        out_ref[...] = jnp.reshape(1.0 - total * inv_n, (1, 1))

    return kernel


def ssim_loss(img1, img2):
    """1 - ssim(img1, img2, data_range=2, size_average=True)."""
    n, c, h, w = img1.shape
    assert img2.shape == img1.shape
    assert h >= WINDOW_SIZE and w >= WINDOW_SIZE
    b = n * c

    def to_lane_dense(im):
        # (N,C,H,W) -> (B,H,W) -> (H,B,W) -> (H, B*W); lane index = b*W + w.
        # dtype is preserved (bf16 stays bf16); upcast happens in-kernel.
        return jnp.transpose(im.reshape(b, h, w), (1, 0, 2)).reshape(h, b * w)

    out = pl.pallas_call(
        _make_ssim_kernel(b, h, w),
        out_shape=jax.ShapeDtypeStruct((1, 1), jnp.float32),
        in_specs=[pl.BlockSpec(memory_space=pltpu.MemorySpace.VMEM)] * 2,
        out_specs=pl.BlockSpec(memory_space=pltpu.MemorySpace.VMEM),
        scratch_shapes=[pltpu.VMEM((h, b * w), jnp.float32) for _ in range(3)],
        # Allow XLA to fuse the relayout above into the custom-call operands
        # (no separate HLO transpose / extra HBM round trip).
        compiler_params=pltpu.CompilerParams(allow_input_fusion=[True, True]),
    )(to_lane_dense(img1), to_lane_dense(img2))
    return out[0, 0]


# ---- pure-JAX reference (same math, plain slicing) used as a self-check. ---
def _ssim_loss_ref(img1, img2):
    n, c, h, w = img1.shape
    b = n * c
    x = img1.reshape(b, h, w).astype(jnp.float32)
    y = img2.reshape(b, h, w).astype(jnp.float32)
    ho = h - WINDOW_SIZE + 1
    wo = w - WINDOW_SIZE + 1

    def filt(a):
        t = sum(_WIN[k] * a[:, k:k + ho, :] for k in range(WINDOW_SIZE))
        return sum(_WIN[k] * t[:, :, k:k + wo] for k in range(WINDOW_SIZE))

    mu1, mu2 = filt(x), filt(y)
    e11, e22, e12 = filt(x * x), filt(y * y), filt(x * y)
    s1, s2, s12 = e11 - mu1 * mu1, e22 - mu2 * mu2, e12 - mu1 * mu2
    cs = (2.0 * s12 + C2) / (s1 + s2 + C2)
    ssim_map = ((2.0 * mu1 * mu2 + C1) / (mu1 * mu1 + mu2 * mu2 + C1)) * cs
    return 1.0 - jnp.mean(ssim_map)


if __name__ == "__main__":
    key = jax.random.PRNGKey(0)
    k1, k2 = jax.random.split(key)
    # data_range=2 -> images assumed in [-1, 1]
    img1 = jax.random.uniform(k1, (2, 4, 16, 16), jnp.float32, -1.0, 1.0)
    img2 = jax.random.uniform(k2, (2, 4, 16, 16), jnp.float32, -1.0, 1.0)

    loss = jax.jit(ssim_loss)(img1, img2)
    jax.block_until_ready(loss)

    ref = _ssim_loss_ref(img1, img2)
    assert abs(float(loss) - float(ref)) < 1e-4, (float(loss), float(ref))
    print("KERNEL_OK")
</pallas_src>

<mosaic_0001>
module attributes {stable_mosaic.version = 11 : i64} {
  func.func @kernel(%arg0: memref<16x128xf32, #tpu.memory_space<vmem>>, %arg1: memref<16x128xf32, #tpu.memory_space<vmem>>, %arg2: memref<1x1xf32, #tpu.memory_space<vmem>>, %arg3: memref<16x128xf32, #tpu.memory_space<vmem>>, %arg4: memref<16x128xf32, #tpu.memory_space<vmem>>, %arg5: memref<16x128xf32, #tpu.memory_space<vmem>>) attributes {dimension_semantics = [], scalar_prefetch = 0 : i64, scratch_operands = 3 : i64, tpu.core_type = #tpu.core_type<tc>} {
    %c0 = arith.constant 0 : index
    %c0_0 = arith.constant 0 : index
    %0 = vector.load %arg0[%c0, %c0_0] : memref<16x128xf32, #tpu.memory_space<vmem>>, vector<16x128xf32>
    %c0_1 = arith.constant 0 : index
    %c0_2 = arith.constant 0 : index
    %1 = vector.load %arg1[%c0_1, %c0_2] : memref<16x128xf32, #tpu.memory_space<vmem>>, vector<16x128xf32>
    %2 = arith.mulf %0, %0 : vector<16x128xf32>
    %c0_3 = arith.constant 0 : index
    %c0_4 = arith.constant 0 : index
    %3 = vector.load %arg3[%c0_3, %c0_4] : memref<16x128xf32, #tpu.memory_space<vmem>>, vector<16x128xf32>
    tpu.vector_store %arg3[%c0_3, %c0_4], %2 {strides = array<i32>} : memref<16x128xf32, #tpu.memory_space<vmem>>, vector<16x128xf32>,
    %4 = arith.mulf %1, %1 : vector<16x128xf32>
    %c0_5 = arith.constant 0 : index
    %c0_6 = arith.constant 0 : index
    %5 = vector.load %arg4[%c0_5, %c0_6] : memref<16x128xf32, #tpu.memory_space<vmem>>, vector<16x128xf32>
    tpu.vector_store %arg4[%c0_5, %c0_6], %4 {strides = array<i32>} : memref<16x128xf32, #tpu.memory_space<vmem>>, vector<16x128xf32>,
    %6 = arith.mulf %0, %1 : vector<16x128xf32>
    %c0_7 = arith.constant 0 : index
    %c0_8 = arith.constant 0 : index
    %7 = vector.load %arg5[%c0_7, %c0_8] : memref<16x128xf32, #tpu.memory_space<vmem>>, vector<16x128xf32>
    tpu.vector_store %arg5[%c0_7, %c0_8], %6 {strides = array<i32>} : memref<16x128xf32, #tpu.memory_space<vmem>>, vector<16x128xf32>,
    %c0_9 = arith.constant 0 : index
    %c0_10 = arith.constant 0 : index
    %8 = vector.load %arg0[%c0_9, %c0_10] : memref<16x128xf32, #tpu.memory_space<vmem>>, vector<6x128xf32>
    %cst = arith.constant 0.00102838012 : f32
    %9 = vector.broadcast %cst : f32 to vector<6x128xf32>
    %10 = arith.mulf %9, %8 : vector<6x128xf32>
    %c1 = arith.constant 1 : index
    %c0_11 = arith.constant 0 : index
    %11 = vector.load %arg0[%c1, %c0_11] : memref<16x128xf32, #tpu.memory_space<vmem>>, vector<6x128xf32>
    %cst_12 = arith.constant 0.00759875821 : f32
    %12 = vector.broadcast %cst_12 : f32 to vector<6x128xf32>
    %13 = arith.mulf %12, %11 : vector<6x128xf32>
    %14 = arith.addf %10, %13 : vector<6x128xf32>
    %c2 = arith.constant 2 : index
    %c0_13 = arith.constant 0 : index
    %15 = vector.load %arg0[%c2, %c0_13] : memref<16x128xf32, #tpu.memory_space<vmem>>, vector<6x128xf32>
    %cst_14 = arith.constant 0.0360007733 : f32
    %16 = vector.broadcast %cst_14 : f32 to vector<6x128xf32>
    %17 = arith.mulf %16, %15 : vector<6x128xf32>
    %18 = arith.addf %14, %17 : vector<6x128xf32>
    %c3 = arith.constant 3 : index
    %c0_15 = arith.constant 0 : index
    %19 = vector.load %arg0[%c3, %c0_15] : memref<16x128xf32, #tpu.memory_space<vmem>>, vector<6x128xf32>
    %cst_16 = arith.constant 0.109360687 : f32
    %20 = vector.broadcast %cst_16 : f32 to vector<6x128xf32>
    %21 = arith.mulf %20, %19 : vector<6x128xf32>
    %22 = arith.addf %18, %21 : vector<6x128xf32>
    %c4 = arith.constant 4 : index
    %c0_17 = arith.constant 0 : index
    %23 = vector.load %arg0[%c4, %c0_17] : memref<16x128xf32, #tpu.memory_space<vmem>>, vector<6x128xf32>
    %cst_18 = arith.constant 0.213005543 : f32
    %24 = vector.broadcast %cst_18 : f32 to vector<6x128xf32>
    %25 = arith.mulf %24, %23 : vector<6x128xf32>
    %26 = arith.addf %22, %25 : vector<6x128xf32>
    %c5 = arith.constant 5 : index
    %c0_19 = arith.constant 0 : index
    %27 = vector.load %arg0[%c5, %c0_19] : memref<16x128xf32, #tpu.memory_space<vmem>>, vector<6x128xf32>
    %cst_20 = arith.constant 0.266011715 : f32
    %28 = vector.broadcast %cst_20 : f32 to vector<6x128xf32>
    %29 = arith.mulf %28, %27 : vector<6x128xf32>
    %30 = arith.addf %26, %29 : vector<6x128xf32>
    %c6 = arith.constant 6 : index
    %c0_21 = arith.constant 0 : index
    %31 = vector.load %arg0[%c6, %c0_21] : memref<16x128xf32, #tpu.memory_space<vmem>>, vector<6x128xf32>
    %cst_22 = arith.constant 0.213005543 : f32
    %32 = vector.broadcast %cst_22 : f32 to vector<6x128xf32>
    %33 = arith.mulf %32, %31 : vector<6x128xf32>
    %34 = arith.addf %30, %33 : vector<6x128xf32>
    %c7 = arith.constant 7 : index
    %c0_23 = arith.constant 0 : index
    %35 = vector.load %arg0[%c7, %c0_23] : memref<16x128xf32, #tpu.memory_space<vmem>>, vector<6x128xf32>
    %cst_24 = arith.constant 0.109360687 : f32
    %36 = vector.broadcast %cst_24 : f32 to vector<6x128xf32>
    %37 = arith.mulf %36, %35 : vector<6x128xf32>
    %38 = arith.addf %34, %37 : vector<6x128xf32>
    %c8 = arith.constant 8 : index
    %c0_25 = arith.constant 0 : index
    %39 = vector.load %arg0[%c8, %c0_25] : memref<16x128xf32, #tpu.memory_space<vmem>>, vector<6x128xf32>
    %cst_26 = arith.constant 0.0360007733 : f32
    %40 = vector.broadcast %cst_26 : f32 to vector<6x128xf32>
    %41 = arith.mulf %40, %39 : vector<6x128xf32>
    %42 = arith.addf %38, %41 : vector<6x128xf32>
    %c9 = arith.constant 9 : index
    %c0_27 = arith.constant 0 : index
    %43 = vector.load %arg0[%c9, %c0_27] : memref<16x128xf32, #tpu.memory_space<vmem>>, vector<6x128xf32>
    %cst_28 = arith.constant 0.00759875821 : f32
    %44 = vector.broadcast %cst_28 : f32 to vector<6x128xf32>
    %45 = arith.mulf %44, %43 : vector<6x128xf32>
    %46 = arith.addf %42, %45 : vector<6x128xf32>
    %c10 = arith.constant 10 : index
    %c0_29 = arith.constant 0 : index
    %47 = vector.load %arg0[%c10, %c0_29] : memref<16x128xf32, #tpu.memory_space<vmem>>, vector<6x128xf32>
    %cst_30 = arith.constant 0.00102838012 : f32
    %48 = vector.broadcast %cst_30 : f32 to vector<6x128xf32>
    %49 = arith.mulf %48, %47 : vector<6x128xf32>
    %50 = arith.addf %46, %49 : vector<6x128xf32>
    %c0_31 = arith.constant 0 : index
    %c0_32 = arith.constant 0 : index
    %51 = vector.load %arg1[%c0_31, %c0_32] : memref<16x128xf32, #tpu.memory_space<vmem>>, vector<6x128xf32>
    %cst_33 = arith.constant 0.00102838012 : f32
    %52 = vector.broadcast %cst_33 : f32 to vector<6x128xf32>
    %53 = arith.mulf %52, %51 : vector<6x128xf32>
    %c1_34 = arith.constant 1 : index
    %c0_35 = arith.constant 0 : index
    %54 = vector.load %arg1[%c1_34, %c0_35] : memref<16x128xf32, #tpu.memory_space<vmem>>, vector<6x128xf32>
    %cst_36 = arith.constant 0.00759875821 : f32
    %55 = vector.broadcast %cst_36 : f32 to vector<6x128xf32>
    %56 = arith.mulf %55, %54 : vector<6x128xf32>
    %57 = arith.addf %53, %56 : vector<6x128xf32>
    %c2_37 = arith.constant 2 : index
    %c0_38 = arith.constant 0 : index
    %58 = vector.load %arg1[%c2_37, %c0_38] : memref<16x128xf32, #tpu.memory_space<vmem>>, vector<6x128xf32>
    %cst_39 = arith.constant 0.0360007733 : f32
    %59 = vector.broadcast %cst_39 : f32 to vector<6x128xf32>
    %60 = arith.mulf %59, %58 : vector<6x128xf32>
    %61 = arith.addf %57, %60 : vector<6x128xf32>
    %c3_40 = arith.constant 3 : index
    %c0_41 = arith.constant 0 : index
    %62 = vector.load %arg1[%c3_40, %c0_41] : memref<16x128xf32, #tpu.memory_space<vmem>>, vector<6x128xf32>
    %cst_42 = arith.constant 0.109360687 : f32
    %63 = vector.broadcast %cst_42 : f32 to vector<6x128xf32>
    %64 = arith.mulf %63, %62 : vector<6x128xf32>
    %65 = arith.addf %61, %64 : vector<6x128xf32>
    %c4_43 = arith.constant 4 : index
    %c0_44 = arith.constant 0 : index
    %66 = vector.load %arg1[%c4_43, %c0_44] : memref<16x128xf32, #tpu.memory_space<vmem>>, vector<6x128xf32>
    %cst_45 = arith.constant 0.213005543 : f32
    %67 = vector.broadcast %cst_45 : f32 to vector<6x128xf32>
    %68 = arith.mulf %67, %66 : vector<6x128xf32>
    %69 = arith.addf %65, %68 : vector<6x128xf32>
    %c5_46 = arith.constant 5 : index
    %c0_47 = arith.constant 0 : index
    %70 = vector.load %arg1[%c5_46, %c0_47] : memref<16x128xf32, #tpu.memory_space<vmem>>, vector<6x128xf32>
    %cst_48 = arith.constant 0.266011715 : f32
    %71 = vector.broadcast %cst_48 : f32 to vector<6x128xf32>
    %72 = arith.mulf %71, %70 : vector<6x128xf32>
    %73 = arith.addf %69, %72 : vector<6x128xf32>
    %c6_49 = arith.constant 6 : index
    %c0_50 = arith.constant 0 : index
    %74 = vector.load %arg1[%c6_49, %c0_50] : memref<16x128xf32, #tpu.memory_space<vmem>>, vector<6x128xf32>
    %cst_51 = arith.constant 0.213005543 : f32
    %75 = vector.broadcast %cst_51 : f32 to vector<6x128xf32>
    %76 = arith.mulf %75, %74 : vector<6x128xf32>
    %77 = arith.addf %73, %76 : vector<6x128xf32>
    %c7_52 = arith.constant 7 : index
    %c0_53 = arith.constant 0 : index
    %78 = vector.load %arg1[%c7_52, %c0_53] : memref<16x128xf32, #tpu.memory_space<vmem>>, vector<6x128xf32>
    %cst_54 = arith.constant 0.109360687 : f32
    %79 = vector.broadcast %cst_54 : f32 to vector<6x128xf32>
    %80 = arith.mulf %79, %78 : vector<6x128xf32>
    %81 = arith.addf %77, %80 : vector<6x128xf32>
    %c8_55 = arith.constant 8 : index
    %c0_56 = arith.constant 0 : index
    %82 = vector.load %arg1[%c8_55, %c0_56] : memref<16x128xf32, #tpu.memory_space<vmem>>, vector<6x128xf32>
    %cst_57 = arith.constant 0.0360007733 : f32
    %83 = vector.broadcast %cst_57 : f32 to vector<6x128xf32>
    %84 = arith.mulf %83, %82 : vector<6x128xf32>
    %85 = arith.addf %81, %84 : vector<6x128xf32>
    %c9_58 = arith.constant 9 : index
    %c0_59 = arith.constant 0 : index
    %86 = vector.load %arg1[%c9_58, %c0_59] : memref<16x128xf32, #tpu.memory_space<vmem>>, vector<6x128xf32>
    %cst_60 = arith.constant 0.00759875821 : f32
    %87 = vector.broadcast %cst_60 : f32 to vector<6x128xf32>
    %88 = arith.mulf %87, %86 : vector<6x128xf32>
    %89 = arith.addf %85, %88 : vector<6x128xf32>
    %c10_61 = arith.constant 10 : index
    %c0_62 = arith.constant 0 : index
    %90 = vector.load %arg1[%c10_61, %c0_62] : memref<16x128xf32, #tpu.memory_space<vmem>>, vector<6x128xf32>
    %cst_63 = arith.constant 0.00102838012 : f32
    %91 = vector.broadcast %cst_63 : f32 to vector<6x128xf32>
    %92 = arith.mulf %91, %90 : vector<6x128xf32>
    %93 = arith.addf %89, %92 : vector<6x128xf32>
    %c0_64 = arith.constant 0 : index
    %c0_65 = arith.constant 0 : index
    %94 = vector.load %arg3[%c0_64, %c0_65] : memref<16x128xf32, #tpu.memory_space<vmem>>, vector<6x128xf32>
    %cst_66 = arith.constant 0.00102838012 : f32
    %95 = vector.broadcast %cst_66 : f32 to vector<6x128xf32>
    %96 = arith.mulf %95, %94 : vector<6x128xf32>
    %c1_67 = arith.constant 1 : index
    %c0_68 = arith.constant 0 : index
    %97 = vector.load %arg3[%c1_67, %c0_68] : memref<16x128xf32, #tpu.memory_space<vmem>>, vector<6x128xf32>
    %cst_69 = arith.constant 0.00759875821 : f32
    %98 = vector.broadcast %cst_69 : f32 to vector<6x128xf32>
    %99 = arith.mulf %98, %97 : vector<6x128xf32>
    %100 = arith.addf %96, %99 : vector<6x128xf32>
    %c2_70 = arith.constant 2 : index
    %c0_71 = arith.constant 0 : index
    %101 = vector.load %arg3[%c2_70, %c0_71] : memref<16x128xf32, #tpu.memory_space<vmem>>, vector<6x128xf32>
    %cst_72 = arith.constant 0.0360007733 : f32
    %102 = vector.broadcast %cst_72 : f32 to vector<6x128xf32>
    %103 = arith.mulf %102, %101 : vector<6x128xf32>
    %104 = arith.addf %100, %103 : vector<6x128xf32>
    %c3_73 = arith.constant 3 : index
    %c0_74 = arith.constant 0 : index
    %105 = vector.load %arg3[%c3_73, %c0_74] : memref<16x128xf32, #tpu.memory_space<vmem>>, vector<6x128xf32>
    %cst_75 = arith.constant 0.109360687 : f32
    %106 = vector.broadcast %cst_75 : f32 to vector<6x128xf32>
    %107 = arith.mulf %106, %105 : vector<6x128xf32>
    %108 = arith.addf %104, %107 : vector<6x128xf32>
    %c4_76 = arith.constant 4 : index
    %c0_77 = arith.constant 0 : index
    %109 = vector.load %arg3[%c4_76, %c0_77] : memref<16x128xf32, #tpu.memory_space<vmem>>, vector<6x128xf32>
    %cst_78 = arith.constant 0.213005543 : f32
    %110 = vector.broadcast %cst_78 : f32 to vector<6x128xf32>
    %111 = arith.mulf %110, %109 : vector<6x128xf32>
    %112 = arith.addf %108, %111 : vector<6x128xf32>
    %c5_79 = arith.constant 5 : index
    %c0_80 = arith.constant 0 : index
    %113 = vector.load %arg3[%c5_79, %c0_80] : memref<16x128xf32, #tpu.memory_space<vmem>>, vector<6x128xf32>
    %cst_81 = arith.constant 0.266011715 : f32
    %114 = vector.broadcast %cst_81 : f32 to vector<6x128xf32>
    %115 = arith.mulf %114, %113 : vector<6x128xf32>
    %116 = arith.addf %112, %115 : vector<6x128xf32>
    %c6_82 = arith.constant 6 : index
    %c0_83 = arith.constant 0 : index
    %117 = vector.load %arg3[%c6_82, %c0_83] : memref<16x128xf32, #tpu.memory_space<vmem>>, vector<6x128xf32>
    %cst_84 = arith.constant 0.213005543 : f32
    %118 = vector.broadcast %cst_84 : f32 to vector<6x128xf32>
    %119 = arith.mulf %118, %117 : vector<6x128xf32>
    %120 = arith.addf %116, %119 : vector<6x128xf32>
    %c7_85 = arith.constant 7 : index
    %c0_86 = arith.constant 0 : index
    %121 = vector.load %arg3[%c7_85, %c0_86] : memref<16x128xf32, #tpu.memory_space<vmem>>, vector<6x128xf32>
    %cst_87 = arith.constant 0.109360687 : f32
    %122 = vector.broadcast %cst_87 : f32 to vector<6x128xf32>
    %123 = arith.mulf %122, %121 : vector<6x128xf32>
    %124 = arith.addf %120, %123 : vector<6x128xf32>
    %c8_88 = arith.constant 8 : index
    %c0_89 = arith.constant 0 : index
    %125 = vector.load %arg3[%c8_88, %c0_89] : memref<16x128xf32, #tpu.memory_space<vmem>>, vector<6x128xf32>
    %cst_90 = arith.constant 0.0360007733 : f32
    %126 = vector.broadcast %cst_90 : f32 to vector<6x128xf32>
    %127 = arith.mulf %126, %125 : vector<6x128xf32>
    %128 = arith.addf %124, %127 : vector<6x128xf32>
    %c9_91 = arith.constant 9 : index
    %c0_92 = arith.constant 0 : index
    %129 = vector.load %arg3[%c9_91, %c0_92] : memref<16x128xf32, #tpu.memory_space<vmem>>, vector<6x128xf32>
    %cst_93 = arith.constant 0.00759875821 : f32
    %130 = vector.broadcast %cst_93 : f32 to vector<6x128xf32>
    %131 = arith.mulf %130, %129 : vector<6x128xf32>
    %132 = arith.addf %128, %131 : vector<6x128xf32>
    %c10_94 = arith.constant 10 : index
    %c0_95 = arith.constant 0 : index
    %133 = vector.load %arg3[%c10_94, %c0_95] : memref<16x128xf32, #tpu.memory_space<vmem>>, vector<6x128xf32>
    %cst_96 = arith.constant 0.00102838012 : f32
    %134 = vector.broadcast %cst_96 : f32 to vector<6x128xf32>
    %135 = arith.mulf %134, %133 : vector<6x128xf32>
    %136 = arith.addf %132, %135 : vector<6x128xf32>
    %c0_97 = arith.constant 0 : index
    %c0_98 = arith.constant 0 : index
    %137 = vector.load %arg4[%c0_97, %c0_98] : memref<16x128xf32, #tpu.memory_space<vmem>>, vector<6x128xf32>
    %cst_99 = arith.constant 0.00102838012 : f32
    %138 = vector.broadcast %cst_99 : f32 to vector<6x128xf32>
    %139 = arith.mulf %138, %137 : vector<6x128xf32>
    %c1_100 = arith.constant 1 : index
    %c0_101 = arith.constant 0 : index
    %140 = vector.load %arg4[%c1_100, %c0_101] : memref<16x128xf32, #tpu.memory_space<vmem>>, vector<6x128xf32>
    %cst_102 = arith.constant 0.00759875821 : f32
    %141 = vector.broadcast %cst_102 : f32 to vector<6x128xf32>
    %142 = arith.mulf %141, %140 : vector<6x128xf32>
    %143 = arith.addf %139, %142 : vector<6x128xf32>
    %c2_103 = arith.constant 2 : index
    %c0_104 = arith.constant 0 : index
    %144 = vector.load %arg4[%c2_103, %c0_104] : memref<16x128xf32, #tpu.memory_space<vmem>>, vector<6x128xf32>
    %cst_105 = arith.constant 0.0360007733 : f32
    %145 = vector.broadcast %cst_105 : f32 to vector<6x128xf32>
    %146 = arith.mulf %145, %144 : vector<6x128xf32>
    %147 = arith.addf %143, %146 : vector<6x128xf32>
    %c3_106 = arith.constant 3 : index
    %c0_107 = arith.constant 0 : index
    %148 = vector.load %arg4[%c3_106, %c0_107] : memref<16x128xf32, #tpu.memory_space<vmem>>, vector<6x128xf32>
    %cst_108 = arith.constant 0.109360687 : f32
    %149 = vector.broadcast %cst_108 : f32 to vector<6x128xf32>
    %150 = arith.mulf %149, %148 : vector<6x128xf32>
    %151 = arith.addf %147, %150 : vector<6x128xf32>
    %c4_109 = arith.constant 4 : index
    %c0_110 = arith.constant 0 : index
    %152 = vector.load %arg4[%c4_109, %c0_110] : memref<16x128xf32, #tpu.memory_space<vmem>>, vector<6x128xf32>
    %cst_111 = arith.constant 0.213005543 : f32
    %153 = vector.broadcast %cst_111 : f32 to vector<6x128xf32>
    %154 = arith.mulf %153, %152 : vector<6x128xf32>
    %155 = arith.addf %151, %154 : vector<6x128xf32>
    %c5_112 = arith.constant 5 : index
    %c0_113 = arith.constant 0 : index
    %156 = vector.load %arg4[%c5_112, %c0_113] : memref<16x128xf32, #tpu.memory_space<vmem>>, vector<6x128xf32>
    %cst_114 = arith.constant 0.266011715 : f32
    %157 = vector.broadcast %cst_114 : f32 to vector<6x128xf32>
    %158 = arith.mulf %157, %156 : vector<6x128xf32>
    %159 = arith.addf %155, %158 : vector<6x128xf32>
    %c6_115 = arith.constant 6 : index
    %c0_116 = arith.constant 0 : index
    %160 = vector.load %arg4[%c6_115, %c0_116] : memref<16x128xf32, #tpu.memory_space<vmem>>, vector<6x128xf32>
    %cst_117 = arith.constant 0.213005543 : f32
    %161 = vector.broadcast %cst_117 : f32 to vector<6x128xf32>
    %162 = arith.mulf %161, %160 : vector<6x128xf32>
    %163 = arith.addf %159, %162 : vector<6x128xf32>
    %c7_118 = arith.constant 7 : index
    %c0_119 = arith.constant 0 : index
    %164 = vector.load %arg4[%c7_118, %c0_119] : memref<16x128xf32, #tpu.memory_space<vmem>>, vector<6x128xf32>
    %cst_120 = arith.constant 0.109360687 : f32
    %165 = vector.broadcast %cst_120 : f32 to vector<6x128xf32>
    %166 = arith.mulf %165, %164 : vector<6x128xf32>
    %167 = arith.addf %163, %166 : vector<6x128xf32>
    %c8_121 = arith.constant 8 : index
    %c0_122 = arith.constant 0 : index
    %168 = vector.load %arg4[%c8_121, %c0_122] : memref<16x128xf32, #tpu.memory_space<vmem>>, vector<6x128xf32>
    %cst_123 = arith.constant 0.0360007733 : f32
    %169 = vector.broadcast %cst_123 : f32 to vector<6x128xf32>
    %170 = arith.mulf %169, %168 : vector<6x128xf32>
    %171 = arith.addf %167, %170 : vector<6x128xf32>
    %c9_124 = arith.constant 9 : index
    %c0_125 = arith.constant 0 : index
    %172 = vector.load %arg4[%c9_124, %c0_125] : memref<16x128xf32, #tpu.memory_space<vmem>>, vector<6x128xf32>
    %cst_126 = arith.constant 0.00759875821 : f32
    %173 = vector.broadcast %cst_126 : f32 to vector<6x128xf32>
    %174 = arith.mulf %173, %172 : vector<6x128xf32>
    %175 = arith.addf %171, %174 : vector<6x128xf32>
    %c10_127 = arith.constant 10 : index
    %c0_128 = arith.constant 0 : index
    %176 = vector.load %arg4[%c10_127, %c0_128] : memref<16x128xf32, #tpu.memory_space<vmem>>, vector<6x128xf32>
    %cst_129 = arith.constant 0.00102838012 : f32
    %177 = vector.broadcast %cst_129 : f32 to vector<6x128xf32>
    %178 = arith.mulf %177, %176 : vector<6x128xf32>
    %179 = arith.addf %175, %178 : vector<6x128xf32>
    %c0_130 = arith.constant 0 : index
    %c0_131 = arith.constant 0 : index
    %180 = vector.load %arg5[%c0_130, %c0_131] : memref<16x128xf32, #tpu.memory_space<vmem>>, vector<6x128xf32>
    %cst_132 = arith.constant 0.00102838012 : f32
    %181 = vector.broadcast %cst_132 : f32 to vector<6x128xf32>
    %182 = arith.mulf %181, %180 : vector<6x128xf32>
    %c1_133 = arith.constant 1 : index
    %c0_134 = arith.constant 0 : index
    %183 = vector.load %arg5[%c1_133, %c0_134] : memref<16x128xf32, #tpu.memory_space<vmem>>, vector<6x128xf32>
    %cst_135 = arith.constant 0.00759875821 : f32
    %184 = vector.broadcast %cst_135 : f32 to vector<6x128xf32>
    %185 = arith.mulf %184, %183 : vector<6x128xf32>
    %186 = arith.addf %182, %185 : vector<6x128xf32>
    %c2_136 = arith.constant 2 : index
    %c0_137 = arith.constant 0 : index
    %187 = vector.load %arg5[%c2_136, %c0_137] : memref<16x128xf32, #tpu.memory_space<vmem>>, vector<6x128xf32>
    %cst_138 = arith.constant 0.0360007733 : f32
    %188 = vector.broadcast %cst_138 : f32 to vector<6x128xf32>
    %189 = arith.mulf %188, %187 : vector<6x128xf32>
    %190 = arith.addf %186, %189 : vector<6x128xf32>
    %c3_139 = arith.constant 3 : index
    %c0_140 = arith.constant 0 : index
    %191 = vector.load %arg5[%c3_139, %c0_140] : memref<16x128xf32, #tpu.memory_space<vmem>>, vector<6x128xf32>
    %cst_141 = arith.constant 0.109360687 : f32
    %192 = vector.broadcast %cst_141 : f32 to vector<6x128xf32>
    %193 = arith.mulf %192, %191 : vector<6x128xf32>
    %194 = arith.addf %190, %193 : vector<6x128xf32>
    %c4_142 = arith.constant 4 : index
    %c0_143 = arith.constant 0 : index
    %195 = vector.load %arg5[%c4_142, %c0_143] : memref<16x128xf32, #tpu.memory_space<vmem>>, vector<6x128xf32>
    %cst_144 = arith.constant 0.213005543 : f32
    %196 = vector.broadcast %cst_144 : f32 to vector<6x128xf32>
    %197 = arith.mulf %196, %195 : vector<6x128xf32>
    %198 = arith.addf %194, %197 : vector<6x128xf32>
    %c5_145 = arith.constant 5 : index
    %c0_146 = arith.constant 0 : index
    %199 = vector.load %arg5[%c5_145, %c0_146] : memref<16x128xf32, #tpu.memory_space<vmem>>, vector<6x128xf32>
    %cst_147 = arith.constant 0.266011715 : f32
    %200 = vector.broadcast %cst_147 : f32 to vector<6x128xf32>
    %201 = arith.mulf %200, %199 : vector<6x128xf32>
    %202 = arith.addf %198, %201 : vector<6x128xf32>
    %c6_148 = arith.constant 6 : index
    %c0_149 = arith.constant 0 : index
    %203 = vector.load %arg5[%c6_148, %c0_149] : memref<16x128xf32, #tpu.memory_space<vmem>>, vector<6x128xf32>
    %cst_150 = arith.constant 0.213005543 : f32
    %204 = vector.broadcast %cst_150 : f32 to vector<6x128xf32>
    %205 = arith.mulf %204, %203 : vector<6x128xf32>
    %206 = arith.addf %202, %205 : vector<6x128xf32>
    %c7_151 = arith.constant 7 : index
    %c0_152 = arith.constant 0 : index
    %207 = vector.load %arg5[%c7_151, %c0_152] : memref<16x128xf32, #tpu.memory_space<vmem>>, vector<6x128xf32>
    %cst_153 = arith.constant 0.109360687 : f32
    %208 = vector.broadcast %cst_153 : f32 to vector<6x128xf32>
    %209 = arith.mulf %208, %207 : vector<6x128xf32>
    %210 = arith.addf %206, %209 : vector<6x128xf32>
    %c8_154 = arith.constant 8 : index
    %c0_155 = arith.constant 0 : index
    %211 = vector.load %arg5[%c8_154, %c0_155] : memref<16x128xf32, #tpu.memory_space<vmem>>, vector<6x128xf32>
    %cst_156 = arith.constant 0.0360007733 : f32
    %212 = vector.broadcast %cst_156 : f32 to vector<6x128xf32>
    %213 = arith.mulf %212, %211 : vector<6x128xf32>
    %214 = arith.addf %210, %213 : vector<6x128xf32>
    %c9_157 = arith.constant 9 : index
    %c0_158 = arith.constant 0 : index
    %215 = vector.load %arg5[%c9_157, %c0_158] : memref<16x128xf32, #tpu.memory_space<vmem>>, vector<6x128xf32>
    %cst_159 = arith.constant 0.00759875821 : f32
    %216 = vector.broadcast %cst_159 : f32 to vector<6x128xf32>
    %217 = arith.mulf %216, %215 : vector<6x128xf32>
    %218 = arith.addf %214, %217 : vector<6x128xf32>
    %c10_160 = arith.constant 10 : index
    %c0_161 = arith.constant 0 : index
    %219 = vector.load %arg5[%c10_160, %c0_161] : memref<16x128xf32, #tpu.memory_space<vmem>>, vector<6x128xf32>
    %cst_162 = arith.constant 0.00102838012 : f32
    %220 = vector.broadcast %cst_162 : f32 to vector<6x128xf32>
    %221 = arith.mulf %220, %219 : vector<6x128xf32>
    %222 = arith.addf %218, %221 : vector<6x128xf32>
    %cst_163 = arith.constant 0.266011715 : f32
    %223 = vector.broadcast %cst_163 : f32 to vector<6x128xf32>
    %224 = arith.mulf %223, %50 : vector<6x128xf32>
    %c1_i32 = arith.constant 1 : i32
    %225 = tpu.dynamic_rotate %50 by %c1_i32 dim 1 : vector<6x128xf32>, i32 -> vector<6x128xf32>
    %c127_i32 = arith.constant 127 : i32
    %226 = tpu.dynamic_rotate %50 by %c127_i32 dim 1 : vector<6x128xf32>, i32 -> vector<6x128xf32>
    %227 = arith.addf %225, %226 : vector<6x128xf32>
    %cst_164 = arith.constant 0.213005543 : f32
    %228 = vector.broadcast %cst_164 : f32 to vector<6x128xf32>
    %229 = arith.mulf %228, %227 : vector<6x128xf32>
    %230 = arith.addf %224, %229 : vector<6x128xf32>
    %c2_i32 = arith.constant 2 : i32
    %231 = tpu.dynamic_rotate %50 by %c2_i32 dim 1 : vector<6x128xf32>, i32 -> vector<6x128xf32>
    %c126_i32 = arith.constant 126 : i32
    %232 = tpu.dynamic_rotate %50 by %c126_i32 dim 1 : vector<6x128xf32>, i32 -> vector<6x128xf32>
    %233 = arith.addf %231, %232 : vector<6x128xf32>
    %cst_165 = arith.constant 0.109360687 : f32
    %234 = vector.broadcast %cst_165 : f32 to vector<6x128xf32>
    %235 = arith.mulf %234, %233 : vector<6x128xf32>
    %236 = arith.addf %230, %235 : vector<6x128xf32>
    %c3_i32 = arith.constant 3 : i32
    %237 = tpu.dynamic_rotate %50 by %c3_i32 dim 1 : vector<6x128xf32>, i32 -> vector<6x128xf32>
    %c125_i32 = arith.constant 125 : i32
    %238 = tpu.dynamic_rotate %50 by %c125_i32 dim 1 : vector<6x128xf32>, i32 -> vector<6x128xf32>
    %239 = arith.addf %237, %238 : vector<6x128xf32>
    %cst_166 = arith.constant 0.0360007733 : f32
    %240 = vector.broadcast %cst_166 : f32 to vector<6x128xf32>
    %241 = arith.mulf %240, %239 : vector<6x128xf32>
    %242 = arith.addf %236, %241 : vector<6x128xf32>
    %c4_i32 = arith.constant 4 : i32
    %243 = tpu.dynamic_rotate %50 by %c4_i32 dim 1 : vector<6x128xf32>, i32 -> vector<6x128xf32>
    %c124_i32 = arith.constant 124 : i32
    %244 = tpu.dynamic_rotate %50 by %c124_i32 dim 1 : vector<6x128xf32>, i32 -> vector<6x128xf32>
    %245 = arith.addf %243, %244 : vector<6x128xf32>
    %cst_167 = arith.constant 0.00759875821 : f32
    %246 = vector.broadcast %cst_167 : f32 to vector<6x128xf32>
    %247 = arith.mulf %246, %245 : vector<6x128xf32>
    %248 = arith.addf %242, %247 : vector<6x128xf32>
    %c5_i32 = arith.constant 5 : i32
    %249 = tpu.dynamic_rotate %50 by %c5_i32 dim 1 : vector<6x128xf32>, i32 -> vector<6x128xf32>
    %c123_i32 = arith.constant 123 : i32
    %250 = tpu.dynamic_rotate %50 by %c123_i32 dim 1 : vector<6x128xf32>, i32 -> vector<6x128xf32>
    %251 = arith.addf %249, %250 : vector<6x128xf32>
    %cst_168 = arith.constant 0.00102838012 : f32
    %252 = vector.broadcast %cst_168 : f32 to vector<6x128xf32>
    %253 = arith.mulf %252, %251 : vector<6x128xf32>
    %254 = arith.addf %248, %253 : vector<6x128xf32>
    %cst_169 = arith.constant 0.266011715 : f32
    %255 = vector.broadcast %cst_169 : f32 to vector<6x128xf32>
    %256 = arith.mulf %255, %93 : vector<6x128xf32>
    %c1_i32_170 = arith.constant 1 : i32
    %257 = tpu.dynamic_rotate %93 by %c1_i32_170 dim 1 : vector<6x128xf32>, i32 -> vector<6x128xf32>
    %c127_i32_171 = arith.constant 127 : i32
    %258 = tpu.dynamic_rotate %93 by %c127_i32_171 dim 1 : vector<6x128xf32>, i32 -> vector<6x128xf32>
    %259 = arith.addf %257, %258 : vector<6x128xf32>
    %cst_172 = arith.constant 0.213005543 : f32
    %260 = vector.broadcast %cst_172 : f32 to vector<6x128xf32>
    %261 = arith.mulf %260, %259 : vector<6x128xf32>
    %262 = arith.addf %256, %261 : vector<6x128xf32>
    %c2_i32_173 = arith.constant 2 : i32
    %263 = tpu.dynamic_rotate %93 by %c2_i32_173 dim 1 : vector<6x128xf32>, i32 -> vector<6x128xf32>
    %c126_i32_174 = arith.constant 126 : i32
    %264 = tpu.dynamic_rotate %93 by %c126_i32_174 dim 1 : vector<6x128xf32>, i32 -> vector<6x128xf32>
    %265 = arith.addf %263, %264 : vector<6x128xf32>
    %cst_175 = arith.constant 0.109360687 : f32
    %266 = vector.broadcast %cst_175 : f32 to vector<6x128xf32>
    %267 = arith.mulf %266, %265 : vector<6x128xf32>
    %268 = arith.addf %262, %267 : vector<6x128xf32>
    %c3_i32_176 = arith.constant 3 : i32
    %269 = tpu.dynamic_rotate %93 by %c3_i32_176 dim 1 : vector<6x128xf32>, i32 -> vector<6x128xf32>
    %c125_i32_177 = arith.constant 125 : i32
    %270 = tpu.dynamic_rotate %93 by %c125_i32_177 dim 1 : vector<6x128xf32>, i32 -> vector<6x128xf32>
    %271 = arith.addf %269, %270 : vector<6x128xf32>
    %cst_178 = arith.constant 0.0360007733 : f32
    %272 = vector.broadcast %cst_178 : f32 to vector<6x128xf32>
    %273 = arith.mulf %272, %271 : vector<6x128xf32>
    %274 = arith.addf %268, %273 : vector<6x128xf32>
    %c4_i32_179 = arith.constant 4 : i32
    %275 = tpu.dynamic_rotate %93 by %c4_i32_179 dim 1 : vector<6x128xf32>, i32 -> vector<6x128xf32>
    %c124_i32_180 = arith.constant 124 : i32
    %276 = tpu.dynamic_rotate %93 by %c124_i32_180 dim 1 : vector<6x128xf32>, i32 -> vector<6x128xf32>
    %277 = arith.addf %275, %276 : vector<6x128xf32>
    %cst_181 = arith.constant 0.00759875821 : f32
    %278 = vector.broadcast %cst_181 : f32 to vector<6x128xf32>
    %279 = arith.mulf %278, %277 : vector<6x128xf32>
    %280 = arith.addf %274, %279 : vector<6x128xf32>
    %c5_i32_182 = arith.constant 5 : i32
    %281 = tpu.dynamic_rotate %93 by %c5_i32_182 dim 1 : vector<6x128xf32>, i32 -> vector<6x128xf32>
    %c123_i32_183 = arith.constant 123 : i32
    %282 = tpu.dynamic_rotate %93 by %c123_i32_183 dim 1 : vector<6x128xf32>, i32 -> vector<6x128xf32>
    %283 = arith.addf %281, %282 : vector<6x128xf32>
    %cst_184 = arith.constant 0.00102838012 : f32
    %284 = vector.broadcast %cst_184 : f32 to vector<6x128xf32>
    %285 = arith.mulf %284, %283 : vector<6x128xf32>
    %286 = arith.addf %280, %285 : vector<6x128xf32>
    %cst_185 = arith.constant 0.266011715 : f32
    %287 = vector.broadcast %cst_185 : f32 to vector<6x128xf32>
    %288 = arith.mulf %287, %136 : vector<6x128xf32>
    %c1_i32_186 = arith.constant 1 : i32
    %289 = tpu.dynamic_rotate %136 by %c1_i32_186 dim 1 : vector<6x128xf32>, i32 -> vector<6x128xf32>
    %c127_i32_187 = arith.constant 127 : i32
    %290 = tpu.dynamic_rotate %136 by %c127_i32_187 dim 1 : vector<6x128xf32>, i32 -> vector<6x128xf32>
    %291 = arith.addf %289, %290 : vector<6x128xf32>
    %cst_188 = arith.constant 0.213005543 : f32
    %292 = vector.broadcast %cst_188 : f32 to vector<6x128xf32>
    %293 = arith.mulf %292, %291 : vector<6x128xf32>
    %294 = arith.addf %288, %293 : vector<6x128xf32>
    %c2_i32_189 = arith.constant 2 : i32
    %295 = tpu.dynamic_rotate %136 by %c2_i32_189 dim 1 : vector<6x128xf32>, i32 -> vector<6x128xf32>
    %c126_i32_190 = arith.constant 126 : i32
    %296 = tpu.dynamic_rotate %136 by %c126_i32_190 dim 1 : vector<6x128xf32>, i32 -> vector<6x128xf32>
    %297 = arith.addf %295, %296 : vector<6x128xf32>
    %cst_191 = arith.constant 0.109360687 : f32
    %298 = vector.broadcast %cst_191 : f32 to vector<6x128xf32>
    %299 = arith.mulf %298, %297 : vector<6x128xf32>
    %300 = arith.addf %294, %299 : vector<6x128xf32>
    %c3_i32_192 = arith.constant 3 : i32
    %301 = tpu.dynamic_rotate %136 by %c3_i32_192 dim 1 : vector<6x128xf32>, i32 -> vector<6x128xf32>
    %c125_i32_193 = arith.constant 125 : i32
    %302 = tpu.dynamic_rotate %136 by %c125_i32_193 dim 1 : vector<6x128xf32>, i32 -> vector<6x128xf32>
    %303 = arith.addf %301, %302 : vector<6x128xf32>
    %cst_194 = arith.constant 0.0360007733 : f32
    %304 = vector.broadcast %cst_194 : f32 to vector<6x128xf32>
    %305 = arith.mulf %304, %303 : vector<6x128xf32>
    %306 = arith.addf %300, %305 : vector<6x128xf32>
    %c4_i32_195 = arith.constant 4 : i32
    %307 = tpu.dynamic_rotate %136 by %c4_i32_195 dim 1 : vector<6x128xf32>, i32 -> vector<6x128xf32>
    %c124_i32_196 = arith.constant 124 : i32
    %308 = tpu.dynamic_rotate %136 by %c124_i32_196 dim 1 : vector<6x128xf32>, i32 -> vector<6x128xf32>
    %309 = arith.addf %307, %308 : vector<6x128xf32>
    %cst_197 = arith.constant 0.00759875821 : f32
    %310 = vector.broadcast %cst_197 : f32 to vector<6x128xf32>
    %311 = arith.mulf %310, %309 : vector<6x128xf32>
    %312 = arith.addf %306, %311 : vector<6x128xf32>
    %c5_i32_198 = arith.constant 5 : i32
    %313 = tpu.dynamic_rotate %136 by %c5_i32_198 dim 1 : vector<6x128xf32>, i32 -> vector<6x128xf32>
    %c123_i32_199 = arith.constant 123 : i32
    %314 = tpu.dynamic_rotate %136 by %c123_i32_199 dim 1 : vector<6x128xf32>, i32 -> vector<6x128xf32>
    %315 = arith.addf %313, %314 : vector<6x128xf32>
    %cst_200 = arith.constant 0.00102838012 : f32
    %316 = vector.broadcast %cst_200 : f32 to vector<6x128xf32>
    %317 = arith.mulf %316, %315 : vector<6x128xf32>
    %318 = arith.addf %312, %317 : vector<6x128xf32>
    %cst_201 = arith.constant 0.266011715 : f32
    %319 = vector.broadcast %cst_201 : f32 to vector<6x128xf32>
    %320 = arith.mulf %319, %179 : vector<6x128xf32>
    %c1_i32_202 = arith.constant 1 : i32
    %321 = tpu.dynamic_rotate %179 by %c1_i32_202 dim 1 : vector<6x128xf32>, i32 -> vector<6x128xf32>
    %c127_i32_203 = arith.constant 127 : i32
    %322 = tpu.dynamic_rotate %179 by %c127_i32_203 dim 1 : vector<6x128xf32>, i32 -> vector<6x128xf32>
    %323 = arith.addf %321, %322 : vector<6x128xf32>
    %cst_204 = arith.constant 0.213005543 : f32
    %324 = vector.broadcast %cst_204 : f32 to vector<6x128xf32>
    %325 = arith.mulf %324, %323 : vector<6x128xf32>
    %326 = arith.addf %320, %325 : vector<6x128xf32>
    %c2_i32_205 = arith.constant 2 : i32
    %327 = tpu.dynamic_rotate %179 by %c2_i32_205 dim 1 : vector<6x128xf32>, i32 -> vector<6x128xf32>
    %c126_i32_206 = arith.constant 126 : i32
    %328 = tpu.dynamic_rotate %179 by %c126_i32_206 dim 1 : vector<6x128xf32>, i32 -> vector<6x128xf32>
    %329 = arith.addf %327, %328 : vector<6x128xf32>
    %cst_207 = arith.constant 0.109360687 : f32
    %330 = vector.broadcast %cst_207 : f32 to vector<6x128xf32>
    %331 = arith.mulf %330, %329 : vector<6x128xf32>
    %332 = arith.addf %326, %331 : vector<6x128xf32>
    %c3_i32_208 = arith.constant 3 : i32
    %333 = tpu.dynamic_rotate %179 by %c3_i32_208 dim 1 : vector<6x128xf32>, i32 -> vector<6x128xf32>
    %c125_i32_209 = arith.constant 125 : i32
    %334 = tpu.dynamic_rotate %179 by %c125_i32_209 dim 1 : vector<6x128xf32>, i32 -> vector<6x128xf32>
    %335 = arith.addf %333, %334 : vector<6x128xf32>
    %cst_210 = arith.constant 0.0360007733 : f32
    %336 = vector.broadcast %cst_210 : f32 to vector<6x128xf32>
    %337 = arith.mulf %336, %335 : vector<6x128xf32>
    %338 = arith.addf %332, %337 : vector<6x128xf32>
    %c4_i32_211 = arith.constant 4 : i32
    %339 = tpu.dynamic_rotate %179 by %c4_i32_211 dim 1 : vector<6x128xf32>, i32 -> vector<6x128xf32>
    %c124_i32_212 = arith.constant 124 : i32
    %340 = tpu.dynamic_rotate %179 by %c124_i32_212 dim 1 : vector<6x128xf32>, i32 -> vector<6x128xf32>
    %341 = arith.addf %339, %340 : vector<6x128xf32>
    %cst_213 = arith.constant 0.00759875821 : f32
    %342 = vector.broadcast %cst_213 : f32 to vector<6x128xf32>
    %343 = arith.mulf %342, %341 : vector<6x128xf32>
    %344 = arith.addf %338, %343 : vector<6x128xf32>
    %c5_i32_214 = arith.constant 5 : i32
    %345 = tpu.dynamic_rotate %179 by %c5_i32_214 dim 1 : vector<6x128xf32>, i32 -> vector<6x128xf32>
    %c123_i32_215 = arith.constant 123 : i32
    %346 = tpu.dynamic_rotate %179 by %c123_i32_215 dim 1 : vector<6x128xf32>, i32 -> vector<6x128xf32>
    %347 = arith.addf %345, %346 : vector<6x128xf32>
    %cst_216 = arith.constant 0.00102838012 : f32
    %348 = vector.broadcast %cst_216 : f32 to vector<6x128xf32>
    %349 = arith.mulf %348, %347 : vector<6x128xf32>
    %350 = arith.addf %344, %349 : vector<6x128xf32>
    %cst_217 = arith.constant 0.266011715 : f32
    %351 = vector.broadcast %cst_217 : f32 to vector<6x128xf32>
    %352 = arith.mulf %351, %222 : vector<6x128xf32>
    %c1_i32_218 = arith.constant 1 : i32
    %353 = tpu.dynamic_rotate %222 by %c1_i32_218 dim 1 : vector<6x128xf32>, i32 -> vector<6x128xf32>
    %c127_i32_219 = arith.constant 127 : i32
    %354 = tpu.dynamic_rotate %222 by %c127_i32_219 dim 1 : vector<6x128xf32>, i32 -> vector<6x128xf32>
    %355 = arith.addf %353, %354 : vector<6x128xf32>
    %cst_220 = arith.constant 0.213005543 : f32
    %356 = vector.broadcast %cst_220 : f32 to vector<6x128xf32>
    %357 = arith.mulf %356, %355 : vector<6x128xf32>
    %358 = arith.addf %352, %357 : vector<6x128xf32>
    %c2_i32_221 = arith.constant 2 : i32
    %359 = tpu.dynamic_rotate %222 by %c2_i32_221 dim 1 : vector<6x128xf32>, i32 -> vector<6x128xf32>
    %c126_i32_222 = arith.constant 126 : i32
    %360 = tpu.dynamic_rotate %222 by %c126_i32_222 dim 1 : vector<6x128xf32>, i32 -> vector<6x128xf32>
    %361 = arith.addf %359, %360 : vector<6x128xf32>
    %cst_223 = arith.constant 0.109360687 : f32
    %362 = vector.broadcast %cst_223 : f32 to vector<6x128xf32>
    %363 = arith.mulf %362, %361 : vector<6x128xf32>
    %364 = arith.addf %358, %363 : vector<6x128xf32>
    %c3_i32_224 = arith.constant 3 : i32
    %365 = tpu.dynamic_rotate %222 by %c3_i32_224 dim 1 : vector<6x128xf32>, i32 -> vector<6x128xf32>
    %c125_i32_225 = arith.constant 125 : i32
    %366 = tpu.dynamic_rotate %222 by %c125_i32_225 dim 1 : vector<6x128xf32>, i32 -> vector<6x128xf32>
    %367 = arith.addf %365, %366 : vector<6x128xf32>
    %cst_226 = arith.constant 0.0360007733 : f32
    %368 = vector.broadcast %cst_226 : f32 to vector<6x128xf32>
    %369 = arith.mulf %368, %367 : vector<6x128xf32>
    %370 = arith.addf %364, %369 : vector<6x128xf32>
    %c4_i32_227 = arith.constant 4 : i32
    %371 = tpu.dynamic_rotate %222 by %c4_i32_227 dim 1 : vector<6x128xf32>, i32 -> vector<6x128xf32>
    %c124_i32_228 = arith.constant 124 : i32
    %372 = tpu.dynamic_rotate %222 by %c124_i32_228 dim 1 : vector<6x128xf32>, i32 -> vector<6x128xf32>
    %373 = arith.addf %371, %372 : vector<6x128xf32>
    %cst_229 = arith.constant 0.00759875821 : f32
    %374 = vector.broadcast %cst_229 : f32 to vector<6x128xf32>
    %375 = arith.mulf %374, %373 : vector<6x128xf32>
    %376 = arith.addf %370, %375 : vector<6x128xf32>
    %c5_i32_230 = arith.constant 5 : i32
    %377 = tpu.dynamic_rotate %222 by %c5_i32_230 dim 1 : vector<6x128xf32>, i32 -> vector<6x128xf32>
    %c123_i32_231 = arith.constant 123 : i32
    %378 = tpu.dynamic_rotate %222 by %c123_i32_231 dim 1 : vector<6x128xf32>, i32 -> vector<6x128xf32>
    %379 = arith.addf %377, %378 : vector<6x128xf32>
    %cst_232 = arith.constant 0.00102838012 : f32
    %380 = vector.broadcast %cst_232 : f32 to vector<6x128xf32>
    %381 = arith.mulf %380, %379 : vector<6x128xf32>
    %382 = arith.addf %376, %381 : vector<6x128xf32>
    %383 = arith.mulf %254, %254 : vector<6x128xf32>
    %384 = arith.mulf %286, %286 : vector<6x128xf32>
    %385 = arith.mulf %254, %286 : vector<6x128xf32>
    %386 = arith.subf %318, %383 : vector<6x128xf32>
    %387 = arith.subf %350, %384 : vector<6x128xf32>
    %388 = arith.subf %382, %385 : vector<6x128xf32>
    %cst_233 = arith.constant 2.000000e+00 : f32
    %389 = vector.broadcast %cst_233 : f32 to vector<6x128xf32>
    %390 = arith.mulf %389, %385 : vector<6x128xf32>
    %cst_234 = arith.constant 4.000000e-04 : f32
    %391 = vector.broadcast %cst_234 : f32 to vector<6x128xf32>
    %392 = arith.addf %390, %391 : vector<6x128xf32>
    %cst_235 = arith.constant 2.000000e+00 : f32
    %393 = vector.broadcast %cst_235 : f32 to vector<6x128xf32>
    %394 = arith.mulf %393, %388 : vector<6x128xf32>
    %cst_236 = arith.constant 3.600000e-03 : f32
    %395 = vector.broadcast %cst_236 : f32 to vector<6x128xf32>
    %396 = arith.addf %394, %395 : vector<6x128xf32>
    %397 = arith.mulf %392, %396 : vector<6x128xf32>
    %398 = arith.addf %383, %384 : vector<6x128xf32>
    %cst_237 = arith.constant 4.000000e-04 : f32
    %399 = vector.broadcast %cst_237 : f32 to vector<6x128xf32>
    %400 = arith.addf %398, %399 : vector<6x128xf32>
    %401 = arith.addf %386, %387 : vector<6x128xf32>
    %cst_238 = arith.constant 3.600000e-03 : f32
    %402 = vector.broadcast %cst_238 : f32 to vector<6x128xf32>
    %403 = arith.addf %401, %402 : vector<6x128xf32>
    %404 = arith.mulf %400, %403 : vector<6x128xf32>
    %405 = arith.divf %397, %404 : vector<6x128xf32>
    %406 = tpu.iota {dimensions = array<i32: 1>} : vector<6x128xi32>
    %c16_i32 = arith.constant 16 : i32
    %c0_i32 = arith.constant 0 : i32
    %407 = arith.cmpi eq, %c16_i32, %c0_i32 : i32
    %c1_i32_239 = arith.constant 1 : i32
    %408 = arith.select %407, %c1_i32_239, %c16_i32 : i32
    %409 = vector.broadcast %408 : i32 to vector<6x128xi32>
    %410 = arith.remsi %406, %409 : vector<6x128xi32>
    %c0_i32_240 = arith.constant 0 : i32
    %411 = vector.broadcast %c0_i32_240 : i32 to vector<6x128xi32>
    %412 = arith.cmpi ne, %410, %411 : vector<6x128xi32>
    %c0_i32_241 = arith.constant 0 : i32
    %413 = vector.broadcast %c0_i32_241 : i32 to vector<6x128xi32>
    %414 = arith.cmpi slt, %410, %413 : vector<6x128xi32>
    %c0_i32_242 = arith.constant 0 : i32
    %415 = arith.cmpi slt, %408, %c0_i32_242 : i32
    %416 = vector.broadcast %415 : i1 to vector<6x128xi1>
    %417 = vector.broadcast %416 : vector<6x128xi1> to vector<6x128xi1>
    %418 = arith.xori %414, %417 : vector<6x128xi1>
    %419 = arith.andi %418, %412 : vector<6x128xi1>
    %420 = vector.broadcast %408 : i32 to vector<6x128xi32>
    %421 = arith.addi %410, %420 : vector<6x128xi32>
    %422 = arith.select %419, %421, %410 : vector<6x128xi1>, vector<6x128xi32>
    %c5_i32_243 = arith.constant 5 : i32
    %423 = vector.broadcast %c5_i32_243 : i32 to vector<6x128xi32>
    %424 = arith.cmpi sge, %422, %423 : vector<6x128xi32>
    %c11_i32 = arith.constant 11 : i32
    %425 = vector.broadcast %c11_i32 : i32 to vector<6x128xi32>
    %426 = arith.cmpi slt, %422, %425 : vector<6x128xi32>
    %427 = arith.andi %424, %426 : vector<6x128xi1>
    %cst_244 = arith.constant 0.000000e+00 : f32
    %428 = vector.broadcast %cst_244 : f32 to vector<6x128xf32>
    %429 = arith.select %427, %405, %428 : vector<6x128xi1>, vector<6x128xf32>
    %430 = vector.shape_cast %429 : vector<6x128xf32> to vector<1x6x128xf32>
    %cst_245 = arith.constant dense<0.000000e+00> : vector<1xf32>
    %431 = vector.multi_reduction <add>, %430, %cst_245 [1, 2] : vector<1x6x128xf32> to vector<1xf32>
    %432 = vector.shape_cast %431 : vector<1xf32> to vector<1x1x1xf32>
    %433 = vector.extract %432[0, 0, 0] : f32 from vector<1x1x1xf32>
    %cst_246 = arith.constant 0.00347222225 : f32
    %434 = arith.mulf %433, %cst_246 : f32
    %cst_247 = arith.constant 1.000000e+00 : f32
    %435 = arith.subf %cst_247, %434 : f32
    %436 = vector.broadcast %435 : f32 to vector<1x1xf32>
    %c0_248 = arith.constant 0 : index
    %c0_249 = arith.constant 0 : index
    %437 = vector.load %arg2[%c0_248, %c0_249] : memref<1x1xf32, #tpu.memory_space<vmem>>, vector<1x1xf32>
    tpu.vector_store %arg2[%c0_248, %c0_249], %436 {strides = array<i32>} : memref<1x1xf32, #tpu.memory_space<vmem>>, vector<1x1xf32>,
    return
  }
}

</mosaic_0001>

<llo_original>
// kernel: ssim_loss.1
$region0: #{ssim_loss.1}
  #allocation0 [shape = 'u32[]', space=smem, size = 0x4, offset = 0x4, fixed_abs, tag = 'smem constant byte address 0x4 - core index']
  #allocation1 [shape = 'u32[144,128]{1,0:T(1,128)}', space=vmem, size = 0x12000, scoped, tag = 'internal scratch']
  #allocation2 [shape = 'f32[16,128]{1,0:T(8,128)}', space=vmem, size = 0x2000, scoped, tag = 'scratch operand']
  #allocation3 [shape = 'f32[16,128]{1,0:T(8,128)}', space=vmem, size = 0x2000, scoped, tag = 'scratch operand']
  #allocation4 [shape = 'f32[16,128]{1,0:T(8,128)}', space=vmem, size = 0x2000, scoped, tag = 'scratch operand']
  %s0 = inlined_call_operand.vmem [shape: f32[16,128], index: 0, kind: input, shape index: {}]
  %s1 = inlined_call_operand.vmem [shape: f32[16,128], index: 1, kind: input, shape index: {}]
  %s2 = inlined_call_operand.hbm [shape: f32[1,1], index: 2, kind: output, shape index: {}]
  %s3 = sld [smem:[#allocation0]]
  $region18: #{ssim_loss.1} parent=0
    _
  %s5 = ssub.s32 1, %s3
  %s6 = scalar_select 0, %s5, %s3
  $region1: #{ssim_loss.1} parent=0
    #allocation5 [shape = 'u8[512]{0}', space=vmem, size = 0x400, scoped, tag = 'output window, operand 0, single buffered']
    #allocation6 [shape = 's32[1]{0}', space=sflag, size = 0x4, scoped, tag = 'scoped memory for ssim_loss.1']
    %7 = vsyncpa [#allocation6], 0
    // Predicated region
    $region2: #{ssim_loss.1} parent=1 // pred_check
      _
    $region3: #{ssim_loss.1} parent=1 // pred_check_branch
      %9 = sbr.rel (0) target = $region5
    $region4: #{ssim_loss.1} parent=1 // pred_region
      _
    $region5: #{ssim_loss.1} parent=1 // pred_fallthru
      _
    // Predicated region
    $region6: #{ssim_loss.1} parent=1 // pred_check
      _
    $region7: #{ssim_loss.1} parent=1 // pred_check_branch
      %11 = sbr.rel (0) target = $region9
    $region8: #{ssim_loss.1} parent=1 // pred_region
      _
    $region9: #{ssim_loss.1} parent=1 // pred_fallthru
      _
    %v12 = vld [vmem:[%s0] sm:$0xff]
    %v13 = vld [vmem:[%s0 + $0x8] sm:$0xff]
    %v14 = vld [vmem:[%s1] sm:$0xff]
    %v15 = vld [vmem:[%s1 + $0x8] sm:$0xff]
    %v16 = vmul.f32 %v12, %v12
    %v17 = vmul.f32 %v13, %v13
    %18 = vst [vmem:[#allocation2] sm:$0xff] %v16
    %19 = vst [vmem:[#allocation2 + $0x8] sm:$0xff] %v17
    %v20 = vmul.f32 %v14, %v14
    %v21 = vmul.f32 %v15, %v15
    %22 = vst [vmem:[#allocation3] sm:$0xff] %v20
    %23 = vst [vmem:[#allocation3 + $0x8] sm:$0xff] %v21
    %v24 = vmul.f32 %v12, %v14
    %v25 = vmul.f32 %v13, %v15
    %26 = vst [vmem:[#allocation4] sm:$0xff] %v24
    %27 = vst [vmem:[#allocation4 + $0x8] sm:$0xff] %v25
    %v28 = vld [vmem:[%s0] sm:$0x3f]
    %v29 = vmul.f32 %v28, 0.0010283801
    %v30 = vld [vmem:[%s0 + $0x1] sm:$0x3f]
    %v31 = vmul.f32 %v30, 0.007598758
    %v32 = vadd.f32 %v29, %v31
    %v33 = vld [vmem:[%s0 + $0x2] sm:$0x3f]
    %v34 = vmul.f32 %v33, 0.036000773
    %v35 = vadd.f32 %v32, %v34
    %v36 = vld [vmem:[%s0 + $0x3] sm:$0x3f]
    %v37 = vmul.f32 %v36, 0.10936069
    %v38 = vadd.f32 %v35, %v37
    %v39 = vld [vmem:[%s0 + $0x4] sm:$0x3f]
    %v40 = vmul.f32 %v39, 0.21300554
    %v41 = vadd.f32 %v38, %v40
    %v42 = vld [vmem:[%s0 + $0x5] sm:$0x3f]
    %v43 = vmul.f32 %v42, 0.26601171
    %v44 = vadd.f32 %v41, %v43
    %v45 = vld [vmem:[%s0 + $0x6] sm:$0x3f]
    %v46 = vmul.f32 %v45, 0.21300554
    %v47 = vadd.f32 %v44, %v46
    %v48 = vld [vmem:[%s0 + $0x7] sm:$0x3f]
    %v49 = vmul.f32 %v48, 0.10936069
    %v50 = vadd.f32 %v47, %v49
    %v51 = vld [vmem:[%s0 + $0x8] sm:$0x3f]
    %v52 = vmul.f32 %v51, 0.036000773
    %v53 = vadd.f32 %v50, %v52
    %v54 = vld [vmem:[%s0 + $0x9] sm:$0x3f]
    %v55 = vmul.f32 %v54, 0.007598758
    %v56 = vadd.f32 %v53, %v55
    %v57 = vld [vmem:[%s0 + $0xa] sm:$0x3f]
    %v58 = vmul.f32 %v57, 0.0010283801
    %v59 = vadd.f32 %v56, %v58
    %v60 = vld [vmem:[%s1] sm:$0x3f]
    %v61 = vmul.f32 %v60, 0.0010283801
    %v62 = vld [vmem:[%s1 + $0x1] sm:$0x3f]
    %v63 = vmul.f32 %v62, 0.007598758
    %v64 = vadd.f32 %v61, %v63
    %v65 = vld [vmem:[%s1 + $0x2] sm:$0x3f]
    %v66 = vmul.f32 %v65, 0.036000773
    %v67 = vadd.f32 %v64, %v66
    %v68 = vld [vmem:[%s1 + $0x3] sm:$0x3f]
    %v69 = vmul.f32 %v68, 0.10936069
    %v70 = vadd.f32 %v67, %v69
    %v71 = vld [vmem:[%s1 + $0x4] sm:$0x3f]
    %v72 = vmul.f32 %v71, 0.21300554
    %v73 = vadd.f32 %v70, %v72
    %v74 = vld [vmem:[%s1 + $0x5] sm:$0x3f]
    %v75 = vmul.f32 %v74, 0.26601171
    %v76 = vadd.f32 %v73, %v75
    %v77 = vld [vmem:[%s1 + $0x6] sm:$0x3f]
    %v78 = vmul.f32 %v77, 0.21300554
    %v79 = vadd.f32 %v76, %v78
    %v80 = vld [vmem:[%s1 + $0x7] sm:$0x3f]
    %v81 = vmul.f32 %v80, 0.10936069
    %v82 = vadd.f32 %v79, %v81
    %v83 = vld [vmem:[%s1 + $0x8] sm:$0x3f]
    %v84 = vmul.f32 %v83, 0.036000773
    %v85 = vadd.f32 %v82, %v84
    %v86 = vld [vmem:[%s1 + $0x9] sm:$0x3f]
    %v87 = vmul.f32 %v86, 0.007598758
    %v88 = vadd.f32 %v85, %v87
    %v89 = vld [vmem:[%s1 + $0xa] sm:$0x3f]
    %v90 = vmul.f32 %v89, 0.0010283801
    %v91 = vadd.f32 %v88, %v90
    %v92 = vld [vmem:[#allocation2] sm:$0x3f]
    %v93 = vmul.f32 %v92, 0.0010283801
    %v94 = vld [vmem:[#allocation2 + $0x1] sm:$0x3f]
    %v95 = vmul.f32 %v94, 0.007598758
    %v96 = vadd.f32 %v93, %v95
    %v97 = vld [vmem:[#allocation2 + $0x2] sm:$0x3f]
    %v98 = vmul.f32 %v97, 0.036000773
    %v99 = vadd.f32 %v96, %v98
    %v100 = vld [vmem:[#allocation2 + $0x3] sm:$0x3f]
    %v101 = vmul.f32 %v100, 0.10936069
    %v102 = vadd.f32 %v99, %v101
    %v103 = vld [vmem:[#allocation2 + $0x4] sm:$0x3f]
    %v104 = vmul.f32 %v103, 0.21300554
    %v105 = vadd.f32 %v102, %v104
    %v106 = vld [vmem:[#allocation2 + $0x5] sm:$0x3f]
    %v107 = vmul.f32 %v106, 0.26601171
    %v108 = vadd.f32 %v105, %v107
    %v109 = vld [vmem:[#allocation2 + $0x6] sm:$0x3f]
    %v110 = vmul.f32 %v109, 0.21300554
    %v111 = vadd.f32 %v108, %v110
    %v112 = vld [vmem:[#allocation2 + $0x7] sm:$0x3f]
    %v113 = vmul.f32 %v112, 0.10936069
    %v114 = vadd.f32 %v111, %v113
    %v115 = vld [vmem:[#allocation2 + $0x8] sm:$0x3f]
    %v116 = vmul.f32 %v115, 0.036000773
    %v117 = vadd.f32 %v114, %v116
    %v118 = vld [vmem:[#allocation2 + $0x9] sm:$0x3f]
    %v119 = vmul.f32 %v118, 0.007598758
    %v120 = vadd.f32 %v117, %v119
    %v121 = vld [vmem:[#allocation2 + $0xa] sm:$0x3f]
    %v122 = vmul.f32 %v121, 0.0010283801
    %v123 = vadd.f32 %v120, %v122
    %v124 = vld [vmem:[#allocation3] sm:$0x3f]
    %v125 = vmul.f32 %v124, 0.0010283801
    %v126 = vld [vmem:[#allocation3 + $0x1] sm:$0x3f]
    %v127 = vmul.f32 %v126, 0.007598758
    %v128 = vadd.f32 %v125, %v127
    %v129 = vld [vmem:[#allocation3 + $0x2] sm:$0x3f]
    %v130 = vmul.f32 %v129, 0.036000773
    %v131 = vadd.f32 %v128, %v130
    %v132 = vld [vmem:[#allocation3 + $0x3] sm:$0x3f]
    %v133 = vmul.f32 %v132, 0.10936069
    %v134 = vadd.f32 %v131, %v133
    %v135 = vld [vmem:[#allocation3 + $0x4] sm:$0x3f]
    %v136 = vmul.f32 %v135, 0.21300554
    %v137 = vadd.f32 %v134, %v136
    %v138 = vld [vmem:[#allocation3 + $0x5] sm:$0x3f]
    %v139 = vmul.f32 %v138, 0.26601171
    %v140 = vadd.f32 %v137, %v139
    %v141 = vld [vmem:[#allocation3 + $0x6] sm:$0x3f]
    %v142 = vmul.f32 %v141, 0.21300554
    %v143 = vadd.f32 %v140, %v142
    %v144 = vld [vmem:[#allocation3 + $0x7] sm:$0x3f]
    %v145 = vmul.f32 %v144, 0.10936069
    %v146 = vadd.f32 %v143, %v145
    %v147 = vld [vmem:[#allocation3 + $0x8] sm:$0x3f]
    %v148 = vmul.f32 %v147, 0.036000773
    %v149 = vadd.f32 %v146, %v148
    %v150 = vld [vmem:[#allocation3 + $0x9] sm:$0x3f]
    %v151 = vmul.f32 %v150, 0.007598758
    %v152 = vadd.f32 %v149, %v151
    %v153 = vld [vmem:[#allocation3 + $0xa] sm:$0x3f]
    %v154 = vmul.f32 %v153, 0.0010283801
    %v155 = vadd.f32 %v152, %v154
    %v156 = vld [vmem:[#allocation4] sm:$0x3f]
    %v157 = vmul.f32 %v156, 0.0010283801
    %v158 = vld [vmem:[#allocation4 + $0x1] sm:$0x3f]
    %v159 = vmul.f32 %v158, 0.007598758
    %v160 = vadd.f32 %v157, %v159
    %v161 = vld [vmem:[#allocation4 + $0x2] sm:$0x3f]
    %v162 = vmul.f32 %v161, 0.036000773
    %v163 = vadd.f32 %v160, %v162
    %v164 = vld [vmem:[#allocation4 + $0x3] sm:$0x3f]
    %v165 = vmul.f32 %v164, 0.10936069
    %v166 = vadd.f32 %v163, %v165
    %v167 = vld [vmem:[#allocation4 + $0x4] sm:$0x3f]
    %v168 = vmul.f32 %v167, 0.21300554
    %v169 = vadd.f32 %v166, %v168
    %v170 = vld [vmem:[#allocation4 + $0x5] sm:$0x3f]
    %v171 = vmul.f32 %v170, 0.26601171
    %v172 = vadd.f32 %v169, %v171
    %v173 = vld [vmem:[#allocation4 + $0x6] sm:$0x3f]
    %v174 = vmul.f32 %v173, 0.21300554
    %v175 = vadd.f32 %v172, %v174
    %v176 = vld [vmem:[#allocation4 + $0x7] sm:$0x3f]
    %v177 = vmul.f32 %v176, 0.10936069
    %v178 = vadd.f32 %v175, %v177
    %v179 = vld [vmem:[#allocation4 + $0x8] sm:$0x3f]
    %v180 = vmul.f32 %v179, 0.036000773
    %v181 = vadd.f32 %v178, %v180
    %v182 = vld [vmem:[#allocation4 + $0x9] sm:$0x3f]
    %v183 = vmul.f32 %v182, 0.007598758
    %v184 = vadd.f32 %v181, %v183
    %v185 = vld [vmem:[#allocation4 + $0xa] sm:$0x3f]
    %v186 = vmul.f32 %v185, 0.0010283801
    %v187 = vadd.f32 %v184, %v186
    %v188 = vmul.f32 %v59, 0.26601171
    %189 = vrot.lane.b32.xlu0 %v59, 1
    %v190 = vpop.permute.xlu0 %189
    %191 = vrot.lane.b32.xlu0 %v59, 127
    %v192 = vpop.permute.xlu0 %191
    %v193 = vadd.f32 %v190, %v192
    %v194 = vmul.f32 %v193, 0.21300554
    %v195 = vadd.f32 %v188, %v194
    %196 = vrot.lane.b32.xlu0 %v59, 2
    %v197 = vpop.permute.xlu0 %196
    %198 = vrot.lane.b32.xlu0 %v59, 126
    %v199 = vpop.permute.xlu0 %198
    %v200 = vadd.f32 %v197, %v199
    %v201 = vmul.f32 %v200, 0.10936069
    %v202 = vadd.f32 %v195, %v201
    %203 = vrot.lane.b32.xlu0 %v59, 3
    %v204 = vpop.permute.xlu0 %203
    %205 = vrot.lane.b32.xlu0 %v59, 125
    %v206 = vpop.permute.xlu0 %205
    %v207 = vadd.f32 %v204, %v206
    %v208 = vmul.f32 %v207, 0.036000773
    %v209 = vadd.f32 %v202, %v208
    %210 = vrot.lane.b32.xlu0 %v59, 4
    %v211 = vpop.permute.xlu0 %210
    %212 = vrot.lane.b32.xlu0 %v59, 124
    %v213 = vpop.permute.xlu0 %212
    %v214 = vadd.f32 %v211, %v213
    %v215 = vmul.f32 %v214, 0.007598758
    %v216 = vadd.f32 %v209, %v215
    %217 = vrot.lane.b32.xlu0 %v59, 5
    %v218 = vpop.permute.xlu0 %217
    %219 = vrot.lane.b32.xlu0 %v59, 123
    %v220 = vpop.permute.xlu0 %219
    %v221 = vadd.f32 %v218, %v220
    %v222 = vmul.f32 %v221, 0.0010283801
    %v223 = vadd.f32 %v216, %v222
    %v224 = vmul.f32 %v91, 0.26601171
    %225 = vrot.lane.b32.xlu0 %v91, 1
    %v226 = vpop.permute.xlu0 %225
    %227 = vrot.lane.b32.xlu0 %v91, 127
    %v228 = vpop.permute.xlu0 %227
    %v229 = vadd.f32 %v226, %v228
    %v230 = vmul.f32 %v229, 0.21300554
    %v231 = vadd.f32 %v224, %v230
    %232 = vrot.lane.b32.xlu0 %v91, 2
    %v233 = vpop.permute.xlu0 %232
    %234 = vrot.lane.b32.xlu0 %v91, 126
    %v235 = vpop.permute.xlu0 %234
    %v236 = vadd.f32 %v233, %v235
    %v237 = vmul.f32 %v236, 0.10936069
    %v238 = vadd.f32 %v231, %v237
    %239 = vrot.lane.b32.xlu0 %v91, 3
    %v240 = vpop.permute.xlu0 %239
    %241 = vrot.lane.b32.xlu0 %v91, 125
    %v242 = vpop.permute.xlu0 %241
    %v243 = vadd.f32 %v240, %v242
    %v244 = vmul.f32 %v243, 0.036000773
    %v245 = vadd.f32 %v238, %v244
    %246 = vrot.lane.b32.xlu0 %v91, 4
    %v247 = vpop.permute.xlu0 %246
    %248 = vrot.lane.b32.xlu0 %v91, 124
    %v249 = vpop.permute.xlu0 %248
    %v250 = vadd.f32 %v247, %v249
    %v251 = vmul.f32 %v250, 0.007598758
    %v252 = vadd.f32 %v245, %v251
    %253 = vrot.lane.b32.xlu0 %v91, 5
    %v254 = vpop.permute.xlu0 %253
    %255 = vrot.lane.b32.xlu0 %v91, 123
    %v256 = vpop.permute.xlu0 %255
    %v257 = vadd.f32 %v254, %v256
    %v258 = vmul.f32 %v257, 0.0010283801
    %v259 = vadd.f32 %v252, %v258
    %v260 = vmul.f32 %v123, 0.26601171
    %261 = vrot.lane.b32.xlu0 %v123, 1
    %v262 = vpop.permute.xlu0 %261
    %263 = vrot.lane.b32.xlu0 %v123, 127
    %v264 = vpop.permute.xlu0 %263
    %v265 = vadd.f32 %v262, %v264
    %v266 = vmul.f32 %v265, 0.21300554
    %v267 = vadd.f32 %v260, %v266
    %268 = vrot.lane.b32.xlu0 %v123, 2
    %v269 = vpop.permute.xlu0 %268
    %270 = vrot.lane.b32.xlu0 %v123, 126
    %v271 = vpop.permute.xlu0 %270
    %v272 = vadd.f32 %v269, %v271
    %v273 = vmul.f32 %v272, 0.10936069
    %v274 = vadd.f32 %v267, %v273
    %275 = vrot.lane.b32.xlu0 %v123, 3
    %v276 = vpop.permute.xlu0 %275
    %277 = vrot.lane.b32.xlu0 %v123, 125
    %v278 = vpop.permute.xlu0 %277
    %v279 = vadd.f32 %v276, %v278
    %v280 = vmul.f32 %v279, 0.036000773
    %v281 = vadd.f32 %v274, %v280
    %282 = vrot.lane.b32.xlu0 %v123, 4
    %v283 = vpop.permute.xlu0 %282
    %284 = vrot.lane.b32.xlu0 %v123, 124
    %v285 = vpop.permute.xlu0 %284
    %v286 = vadd.f32 %v283, %v285
    %v287 = vmul.f32 %v286, 0.007598758
    %v288 = vadd.f32 %v281, %v287
    %289 = vrot.lane.b32.xlu0 %v123, 5
    %v290 = vpop.permute.xlu0 %289
    %291 = vrot.lane.b32.xlu0 %v123, 123
    %v292 = vpop.permute.xlu0 %291
    %v293 = vadd.f32 %v290, %v292
    %v294 = vmul.f32 %v293, 0.0010283801
    %v295 = vadd.f32 %v288, %v294
    %v296 = vmul.f32 %v155, 0.26601171
    %297 = vrot.lane.b32.xlu0 %v155, 1
    %v298 = vpop.permute.xlu0 %297
    %299 = vrot.lane.b32.xlu0 %v155, 127
    %v300 = vpop.permute.xlu0 %299
    %v301 = vadd.f32 %v298, %v300
    %v302 = vmul.f32 %v301, 0.21300554
    %v303 = vadd.f32 %v296, %v302
    %304 = vrot.lane.b32.xlu0 %v155, 2
    %v305 = vpop.permute.xlu0 %304
    %306 = vrot.lane.b32.xlu0 %v155, 126
    %v307 = vpop.permute.xlu0 %306
    %v308 = vadd.f32 %v305, %v307
    %v309 = vmul.f32 %v308, 0.10936069
    %v310 = vadd.f32 %v303, %v309
    %311 = vrot.lane.b32.xlu0 %v155, 3
    %v312 = vpop.permute.xlu0 %311
    %313 = vrot.lane.b32.xlu0 %v155, 125
    %v314 = vpop.permute.xlu0 %313
    %v315 = vadd.f32 %v312, %v314
    %v316 = vmul.f32 %v315, 0.036000773
    %v317 = vadd.f32 %v310, %v316
    %318 = vrot.lane.b32.xlu0 %v155, 4
    %v319 = vpop.permute.xlu0 %318
    %320 = vrot.lane.b32.xlu0 %v155, 124
    %v321 = vpop.permute.xlu0 %320
    %v322 = vadd.f32 %v319, %v321
    %v323 = vmul.f32 %v322, 0.007598758
    %v324 = vadd.f32 %v317, %v323
    %325 = vrot.lane.b32.xlu0 %v155, 5
    %v326 = vpop.permute.xlu0 %325
    %327 = vrot.lane.b32.xlu0 %v155, 123
    %v328 = vpop.permute.xlu0 %327
    %v329 = vadd.f32 %v326, %v328
    %v330 = vmul.f32 %v329, 0.0010283801
    %v331 = vadd.f32 %v324, %v330
    %v332 = vmul.f32 %v187, 0.26601171
    %333 = vrot.lane.b32.xlu0 %v187, 1
    %v334 = vpop.permute.xlu0 %333
    %335 = vrot.lane.b32.xlu0 %v187, 127
    %v336 = vpop.permute.xlu0 %335
    %v337 = vadd.f32 %v334, %v336
    %v338 = vmul.f32 %v337, 0.21300554
    %v339 = vadd.f32 %v332, %v338
    %340 = vrot.lane.b32.xlu0 %v187, 2
    %v341 = vpop.permute.xlu0 %340
    %342 = vrot.lane.b32.xlu0 %v187, 126
    %v343 = vpop.permute.xlu0 %342
    %v344 = vadd.f32 %v341, %v343
    %v345 = vmul.f32 %v344, 0.10936069
    %v346 = vadd.f32 %v339, %v345
    %347 = vrot.lane.b32.xlu0 %v187, 3
    %v348 = vpop.permute.xlu0 %347
    %349 = vrot.lane.b32.xlu0 %v187, 125
    %v350 = vpop.permute.xlu0 %349
    %v351 = vadd.f32 %v348, %v350
    %v352 = vmul.f32 %v351, 0.036000773
    %v353 = vadd.f32 %v346, %v352
    %354 = vrot.lane.b32.xlu0 %v187, 4
    %v355 = vpop.permute.xlu0 %354
    %356 = vrot.lane.b32.xlu0 %v187, 124
    %v357 = vpop.permute.xlu0 %356
    %v358 = vadd.f32 %v355, %v357
    %v359 = vmul.f32 %v358, 0.007598758
    %v360 = vadd.f32 %v353, %v359
    %361 = vrot.lane.b32.xlu0 %v187, 5
    %v362 = vpop.permute.xlu0 %361
    %363 = vrot.lane.b32.xlu0 %v187, 123
    %v364 = vpop.permute.xlu0 %363
    %v365 = vadd.f32 %v362, %v364
    %v366 = vmul.f32 %v365, 0.0010283801
    %v367 = vadd.f32 %v360, %v366
    %v368 = vmul.f32 %v223, %v223
    %v369 = vmul.f32 %v259, %v259
    %v370 = vmul.f32 %v223, %v259
    %v371 = vsub.f32 %v295, %v368
    %v372 = vsub.f32 %v331, %v369
    %v373 = vsub.f32 %v367, %v370
    %v374 = vmul.f32 %v370, 2.0
    %v375 = vadd.f32 %v374, 0.0004
    %v376 = vmul.f32 %v373, 2.0
    %v377 = vadd.f32 %v376, 0.0036
    %v378 = vmul.f32 %v375, %v377
    %v379 = vadd.f32 %v368, %v369
    %v380 = vadd.f32 %v379, 0.0004
    %v381 = vadd.f32 %v371, %v372
    %v382 = vadd.f32 %v381, 0.0036
    %v383 = vmul.f32 %v380, %v382
    %v384 = vrcp.pop %v383
    %v385 = vmul.f32 %v378, %v384
    %v386 = vlaneseq
    %v387 = vand.u32 %v386, 127
    %vm388 = vcmp.lt.s32.totalorder %v387, 0
    %v389 = vsub.s32 0, %v387
    %v390 = vsel %vm388, %v389, %v387
    %v391 = vshrl.u32 %v390, 4
    %v392 = vand.u32 %v390, 15
    %v393 = vsub.s32 0, %v392
    %v394 = vsel %vm388, %v393, %v392
    %vm395 = vcmp.ne.s32.totalorder %v394, 0
    %vm396 = vcmp.lt.s32.totalorder %v394, 0
    %vm397 = vmand %vm396, %vm395
    %v398 = vadd.s32 %v394, 16
    %v399 = vsel %vm397, %v398, %v394
    %vm400 = vcmp.ge.s32.totalorder %v399, 5
    %vm401 = vcmp.lt.s32.totalorder %v399, 11
    %vm402 = vmand %vm400, %vm401
    %v403 = vsel %vm402, %v385, 0.0
    %vm404 = vcmask 1045504
    %v405 = vsel %vm404, %v403, 0.0
    %406 = vadd.xlane.f32.xlu0 %v405
    %v407 = vpop.xlane.xlu0 %406
    %v408 = vrot.slane %v407, 4
    %v409 = vadd.f32 %v407, %v408
    %v410 = vrot.slane %v409, 2
    %v411 = vadd.f32 %v409, %v410
    %v412 = vrot.slane %v411, 1
    %v413 = vadd.f32 %v411, %v412
    %s414 = vtos %v413
    %s415 = smul.f32 %s414, 0.0034722222
    %s416 = ssub.f32 1.0, %s415
    %v417 = vstv %s416
    %vm418 = vcmask 0
    %419 = vst.msk [vmem:[#allocation5] sm:$0x1] %vm418, %v417
    // Predicated region
    $region10: #{ssim_loss.1} parent=1 // pred_check
      _
    $region11: #{ssim_loss.1} parent=1 // pred_check_branch
      %421 = sbr.rel (0) target = $region13
    $region12: #{ssim_loss.1} parent=1 // pred_region
      %s423 = ssub.s32 16, 16
      %424 = vsyncadd [#allocation6], %s423
      %s426 = sshll.u32 [#allocation5], 4
      %s427 = int_to_ptr.vmem [resolvable:$true] %s426
      %429 = dma.vmem_to_hbm [thread:$0]  %s427, 16, %s2, [#allocation6]
    $region13: #{ssim_loss.1} parent=1 // pred_fallthru
      _
    // Predicated region
    $region14: #{ssim_loss.1} parent=1 // pred_check
      _
    $region15: #{ssim_loss.1} parent=1 // pred_check_branch
      %431 = sbr.rel (0) target = $region17
    $region16: #{ssim_loss.1} parent=1 // pred_region
      %432 = dma.done [#allocation6], 16
    $region17: #{ssim_loss.1} parent=1 // pred_fallthru
      _
    %433 = vsyncpa [#allocation6], 1

</llo_original>
